<compile_context>
chip_gen: v6e
topology: v6e:2x2x1
jax: 0.10.0
libtpu: 0.0.40
codegen_flags: <defaults>
</compile_context>

<pallas_src>
import functools

import jax
import jax.numpy as jnp
from jax.experimental import pallas as pl
from jax.experimental.pallas import tpu as pltpu

NEG_SLOPE = 0.01  # PyTorch F.leaky_relu default
_LANE = 128
# Below this many elements a fused XLA elementwise op beats pallas_call launch
# overhead.  Kept small here so the demo shapes exercise the kernel;
# production callers can raise it to ~64K.
_MIN_PALLAS_ELEMS = 1024


def _leaky(x):
    # For 0 < slope < 1: max(x, slope*x) == leaky_relu(x); NaN still propagates.
    return jnp.maximum(x, x * jnp.asarray(NEG_SLOPE, x.dtype))


def _leaky_relu_kernel(x_ref, o_ref):
    x = x_ref[...]
    o_ref[...] = jnp.maximum(x, x * jnp.asarray(NEG_SLOPE, x.dtype))


@functools.lru_cache(maxsize=None)
def _tiling_params():
    """Generation-aware (tile_bytes, min_grid_steps).

    4 * tile_bytes (double-buffered input + output) stays under the default
    scoped-VMEM budget on each generation:
      v5e: 2 MiB ->  8 MiB (16 MiB scoped default)
      v6e: 4 MiB -> 16 MiB (32 MiB scoped default)
      v7x: 6 MiB -> 24 MiB (32 MiB scoped default), plus >= 8 grid steps so
           the "parallel" grid axis can be sharded across its 2 TensorCores.
    """
    try:
        kind = jax.devices()[0].device_kind.lower()
    except Exception:  # pragma: no cover - defensive; never fail kernel setup
        kind = ""
    if "v7" in kind or "tpu7" in kind:
        return 6 * 1024 * 1024, 8
    if "v6" in kind:
        return 4 * 1024 * 1024, 1
    if "v5" in kind:
        return 2 * 1024 * 1024, 1
    return 2 * 1024 * 1024, 1


def _leaky_relu_2d(x2d):
    """Pallas leaky-relu over a lane-dense (rows, 128) slab."""
    rows, lane = x2d.shape
    dtype = x2d.dtype
    itemsize = jnp.dtype(dtype).itemsize
    # dtype-aware native sublane packing: f32 -> 8, bf16 -> 16, int8/fp8 -> 32
    sub = {4: 8, 2: 16, 1: 32}.get(itemsize, 8)

    tile_bytes, min_steps = _tiling_params()
    target_rows = max(sub, tile_bytes // (lane * itemsize))

    if rows <= sub:
        block_rows = rows  # tiny input: full-extent block
    else:
        # Keep at least `min_steps` grid steps (v7x 2-TC sharding + pipelining)
        cap = max(sub, pl.cdiv(rows, min_steps))
        block_rows = min(target_rows, rows, cap)
        block_rows = max(sub, (block_rows // sub) * sub)

    grid = (pl.cdiv(rows, block_rows),)  # last block may be ragged; masked

    return pl.pallas_call(
        _leaky_relu_kernel,
        out_shape=jax.ShapeDtypeStruct((rows, lane), dtype),
        grid_spec=pltpu.PrefetchScalarGridSpec(
            num_scalar_prefetch=0,
            grid=grid,
            in_specs=[pl.BlockSpec((block_rows, lane), lambda i: (i, 0))],
            out_specs=pl.BlockSpec((block_rows, lane), lambda i: (i, 0)),
        ),
        compiler_params=pltpu.CompilerParams(
            dimension_semantics=("parallel",)
        ),
    )(x2d)


@jax.jit
def leaky_relu_pallas(x: jax.Array) -> jax.Array:
    """Elementwise leaky ReLU (negative_slope=0.01), matching F.leaky_relu."""
    orig_shape = x.shape
    total = x.size

    # Tiny inputs: pallas_call launch/pipeline setup exceeds a fused XLA op.
    if total < _MIN_PALLAS_ELEMS:
        return _leaky(x)

    if total % _LANE != 0:
        # Rare non-128-aligned case: a single fused XLA elementwise op is
        # 1 read + 1 write (HBM roofline).  Any kernel stitching (pad/slice or
        # bulk+tail+concat) would add extra full HBM passes.
        return _leaky(x)

    rows = total // _LANE
    x2d = x.reshape(rows, _LANE)  # metadata-only under jit
    return _leaky_relu_2d(x2d).reshape(orig_shape)


if __name__ == "__main__":
    def ref(v):
        return jnp.where(v >= 0, v, v * NEG_SLOPE)

    # Small NCHW activation, consistent with the module's typical usage.
    x = jax.random.normal(jax.random.PRNGKey(0), (2, 4, 16, 16), jnp.float32)
    y = leaky_relu_pallas(x)
    jax.block_until_ready(y)
    assert y.shape == x.shape and y.dtype == x.dtype
    assert jnp.allclose(y, ref(x), atol=1e-6), "mismatch (small aligned)"

    # Larger aligned tensor: multi-step grid / generation-aware tiles.
    x2 = jax.random.normal(jax.random.PRNGKey(1), (8, 32, 64, 64), jnp.float32)
    y2 = leaky_relu_pallas(x2)
    jax.block_until_ready(y2)
    assert jnp.allclose(y2, ref(x2), atol=1e-6), "mismatch (large aligned)"

    # rows not a multiple of the block: exercises ragged-last-block masking.
    x3 = jax.random.normal(jax.random.PRNGKey(2), (7, 11, 13, 128), jnp.float32)
    y3 = leaky_relu_pallas(x3)
    jax.block_until_ready(y3)
    assert jnp.allclose(y3, ref(x3), atol=1e-6), "mismatch (ragged rows)"

    # Non-128-aligned total: fused-XLA fallback path (no pad/slice).
    x4 = jax.random.normal(jax.random.PRNGKey(3), (3, 5, 37, 29), jnp.float32)
    y4 = leaky_relu_pallas(x4)
    jax.block_until_ready(y4)
    assert jnp.allclose(y4, ref(x4), atol=1e-6), "mismatch (unaligned)"

    # Tiny input: early-exit path.
    x5 = jax.random.normal(jax.random.PRNGKey(4), (2, 3, 5), jnp.float32)
    y5 = leaky_relu_pallas(x5)
    jax.block_until_ready(y5)
    assert jnp.allclose(y5, ref(x5), atol=1e-6), "mismatch (tiny)"

    # bf16: exercises dtype-aware sublane rounding (sub=16).
    x6 = jax.random.normal(jax.random.PRNGKey(5), (4, 8, 32, 32), jnp.bfloat16)
    y6 = leaky_relu_pallas(x6)
    jax.block_until_ready(y6)
    y6_ref = jnp.where(x6 >= 0, x6, x6 * jnp.asarray(NEG_SLOPE, jnp.bfloat16))
    assert jnp.allclose(y6.astype(jnp.float32), y6_ref.astype(jnp.float32),
                        rtol=1e-2, atol=1e-3), "mismatch (bf16)"

    print("KERNEL_OK")
</pallas_src>

<mosaic_0001>
module attributes {stable_mosaic.version = 11 : i64} {
  func.func @_leaky_relu_kernel(%arg0: i32, %arg1: memref<16x128xf32, #tpu.memory_space<vmem>>, %arg2: memref<16x128xf32, #tpu.memory_space<vmem>>) attributes {dimension_semantics = [#tpu.dimension_semantics<parallel>], iteration_bounds = array<i64: 1>, scalar_prefetch = 0 : i64, scratch_operands = 0 : i64, tpu.core_type = #tpu.core_type<tc>, window_params = [{transform_indices = @transform_0, window_bounds = array<i64: 16, 128>}, {transform_indices = @transform_1, window_bounds = array<i64: 16, 128>}]} {
    %c0 = arith.constant 0 : index
    %c0_0 = arith.constant 0 : index
    %0 = vector.load %arg1[%c0, %c0_0] : memref<16x128xf32, #tpu.memory_space<vmem>>, vector<16x128xf32>
    %cst = arith.constant 0.00999999977 : f32
    %1 = vector.broadcast %cst : f32 to vector<16x128xf32>
    %2 = arith.mulf %0, %1 : vector<16x128xf32>
    %3 = arith.maximumf %0, %2 : vector<16x128xf32>
    %c0_1 = arith.constant 0 : index
    %c0_2 = arith.constant 0 : index
    %4 = vector.load %arg2[%c0_1, %c0_2] : memref<16x128xf32, #tpu.memory_space<vmem>>, vector<16x128xf32>
    tpu.vector_store %arg2[%c0_1, %c0_2], %3 {strides = array<i32>} : memref<16x128xf32, #tpu.memory_space<vmem>>, vector<16x128xf32>,
    return
  }
  func.func @transform_0(%arg0: i32) -> (i32, i32) {
    %c0_i32 = arith.constant 0 : i32
    %c0_i32_0 = arith.constant 0 : i32
    return %arg0, %c0_i32 : i32, i32
  }
  func.func @transform_1(%arg0: i32) -> (i32, i32) {
    %c0_i32 = arith.constant 0 : i32
    %c0_i32_0 = arith.constant 0 : i32
    return %arg0, %c0_i32 : i32, i32
  }
}

</mosaic_0001>

<llo_original>
// kernel: leaky_relu_pallas.1
$region0: #{leaky_relu_pallas.1}
  #allocation0 [shape = 'u32[]', space=smem, size = 0x4, offset = 0x4, fixed_abs, tag = 'smem constant byte address 0x4 - core index']
  #allocation1 [shape = 'u32[144,128]{1,0:T(1,128)}', space=vmem, size = 0x12000, scoped, tag = 'internal scratch']
  %s0 = inlined_call_operand.vmem [shape: f32[16,128], index: 0, kind: input, shape index: {}]
  %s1 = inlined_call_operand.vmem [shape: f32[16,128], index: 1, kind: output, shape index: {}]
  %s2 = sld [smem:[#allocation0]]
  $region14: #{leaky_relu_pallas.1} parent=0
    _
  %s4 = ssub.s32 1, %s2
  %s5 = scalar_select 0, %s4, %s2
  // Predicated region
  $region2: #{leaky_relu_pallas.1} parent=0 // pred_check
    _
  $region3: #{leaky_relu_pallas.1} parent=0 // pred_check_branch
    %7 = sbr.rel (0) target = $region5
  $region4: #{leaky_relu_pallas.1} parent=0 // pred_region
    _
  $region5: #{leaky_relu_pallas.1} parent=0 // pred_fallthru
    _
  %v8 = vld [vmem:[%s0] sm:$0xff]
  %v9 = vld [vmem:[%s0 + $0x8] sm:$0xff]
  %v10 = vmul.f32 %v8, 0.01
  %v11 = vmul.f32 %v9, 0.01
  %v12 = vmax.f32 %v8, %v10
  %v13 = vmax.f32 %v9, %v11
  %14 = vst [vmem:[%s1] sm:$0xff] %v12
  %15 = vst [vmem:[%s1 + $0x8] sm:$0xff] %v13
  // Predicated region
  $region6: #{leaky_relu_pallas.1} parent=0 // pred_check
    _
  $region7: #{leaky_relu_pallas.1} parent=0 // pred_check_branch
    %17 = sbr.rel (0) target = $region9
  $region8: #{leaky_relu_pallas.1} parent=0 // pred_region
    _
  $region9: #{leaky_relu_pallas.1} parent=0 // pred_fallthru
    _
  // Predicated region
  $region10: #{leaky_relu_pallas.1} parent=0 // pred_check
    _
  $region11: #{leaky_relu_pallas.1} parent=0 // pred_check_branch
    %19 = sbr.rel (0) target = $region13
  $region12: #{leaky_relu_pallas.1} parent=0 // pred_region
    _
  $region13: #{leaky_relu_pallas.1} parent=0 // pred_fallthru
    _

</llo_original>
